<compile_context>
chip_gen: v6e
topology: v6e:2x2x1
jax: 0.10.0
libtpu: 0.0.40
codegen_flags: <defaults>
</compile_context>

<pallas_src>
import functools

import jax
import jax.numpy as jnp
from jax.experimental import pallas as pl
from jax.experimental.pallas import tpu as pltpu


def _round_down(x: int, m: int) -> int:
    return (x // m) * m


def _tpu_info():
    """(vmem_capacity_bytes, tensorcores_per_chip) with conservative fallbacks."""
    vmem_cap = 64 << 20                       # v7x-conservative fallback
    cores = 1
    try:
        vmem_cap = int(pltpu.get_tpu_info().vmem_capacity_bytes)
    except Exception:
        pass
    try:
        dev = jax.devices()[0]
        n = getattr(dev, "num_cores", None)
        if n:
            cores = int(n)
        else:
            kind = str(getattr(dev, "device_kind", "")).lower()
            # Multi-TensorCore chips (megacore v4/v5p, dual-TC v7x).
            if any(tag in kind for tag in ("v4", "v5p", "v7", "7x")):
                cores = 2
    except Exception:
        cores = 1
    return vmem_cap, max(1, cores)


def _choose_tile_b(b: int, f: int, itemsize: int, f_chunk: int,
                   max_tile_b: int, budget_bytes: int) -> int:
    """Largest aligned batch tile fitting the VMEM budget, counting temps."""
    align = 16 if itemsize < 4 else 8         # bf16 packs 16 rows per vreg
    if b <= align:
        return b                              # single block == full array dims
    # Per-row VMEM: double-buffered logits tile + an allowance for per-chunk
    # bool/int32/f32 intermediates the compiler may materialize + side inputs.
    per_row = 2 * f * itemsize + 4 * f_chunk * 4 + 64
    cap = max(align, budget_bytes // per_row)
    tb = min(max_tile_b, cap, b)
    return max(align, _round_down(tb, align))


def _topk_acc_kernel(logits_ref, labels_ref, label_logit_ref, out_ref, acc_ref,
                     *, k, total_batch, chunk_bounds):
    j = pl.program_id(0)                      # outer ("parallel" / per-core) axis
    i = pl.program_id(1)                      # inner ("arbitrary") batch-tile axis
    n_inner = pl.num_programs(1)

    @pl.when(i == 0)
    def _():
        acc_ref[...] = jnp.zeros_like(acc_ref)

    tb, f = logits_ref.shape
    labels = labels_ref[...]                  # (tb, 1) int32
    label_logit = label_logit_ref[...]        # (tb, 1) native dtype (bf16 stays bf16)

    # Single fused sweep over static F-chunks: rank (strictly greater, or equal
    # with a smaller column index -> lowest-index tie-break of topk) and row
    # max carried as (tb, 1) partials.  Compares stay in the native dtype; only
    # the tiny per-row reductions are f32.
    rank = jnp.zeros((tb, 1), jnp.float32)
    row_max = jnp.full((tb, 1), -jnp.inf, jnp.float32)
    for start, width in chunk_bounds:         # static, fully unrolled
        chunk = logits_ref[:, pl.ds(start, width)]
        col = jax.lax.broadcasted_iota(jnp.int32, (tb, width), 1) + start
        beats = (chunk > label_logit) | ((chunk == label_logit) & (col < labels))
        rank = rank + jnp.sum(beats.astype(jnp.float32), axis=1, keepdims=True)
        row_max = jnp.maximum(
            row_max, jnp.max(chunk, axis=1, keepdims=True).astype(jnp.float32))

    in_topk = rank < jnp.float32(k)

    # softmax(label) > 0 guard without a full softmax: exp on one column, f32.
    prob_pos = (jnp.exp(label_logit.astype(jnp.float32) - row_max)
                > jnp.float32(0.0))

    # Out-of-range labels -> miss (reference's eq() is all-False there).
    valid_label = (labels >= 0) & (labels < f)

    # Mask padded rows of partial tiles and clamped duplicate tiles.
    t = j * n_inner + i                       # linear tile id (unclamped)
    row_ids = jax.lax.broadcasted_iota(jnp.int32, (tb, 1), 0) + t * tb
    valid_row = row_ids < total_batch

    acc_ref[...] += (in_topk & prob_pos & valid_label & valid_row).astype(jnp.float32)

    @pl.when(i == n_inner - 1)
    def _():
        out_ref[...] = jnp.sum(acc_ref[...], axis=0, keepdims=True)   # (1, 1)


def topk_accuracy(logits: jax.Array, labels: jax.Array, k: int, *,
                  max_tile_b: int = 1024, max_f_chunk: int = 1024,
                  num_core_splits: int | None = None):
    """Pallas TPU implementation of TopKAccuracy.forward.

    logits: (B, F) float (f32 or bf16 — streamed in its own dtype),
    labels: (B,) int — returns a float32 scalar (mean top-k accuracy).
    """
    assert logits.ndim == 2, "(B, F)"
    assert labels.ndim == 1, "(B,)"
    assert logits.shape[0] == labels.shape[0]
    assert k >= 1
    b, f = logits.shape

    vmem_cap, n_cores = _tpu_info()
    if num_core_splits is None:
        num_core_splits = n_cores             # >1 only on multi-TC chips

    # Generation-aware scoped-VMEM limit, minus a margin for compiler scratch.
    vmem_limit = min(vmem_cap * 3 // 4, 100 << 20)
    tile_budget = max(4 << 20, vmem_limit - (8 << 20))

    itemsize = jnp.dtype(logits.dtype).itemsize
    f_chunk = min(f, max_f_chunk)
    chunk_bounds = []
    start = 0
    while start < f:
        width = min(f_chunk, f - start)
        chunk_bounds.append((start, width))
        start += width

    tile_b = _choose_tile_b(b, f, itemsize, f_chunk, max_tile_b, tile_budget)

    n_tiles = pl.cdiv(b, tile_b)
    n_outer = max(1, min(num_core_splits, n_tiles))
    n_inner = pl.cdiv(n_tiles, n_outer)

    labels_i32 = labels.astype(jnp.int32)
    labels_2d = labels_i32.reshape(b, 1)
    # Hoisted gather of the label-column logit: native dtype (exact for tie
    # detection), touches only B elements; removes the in-kernel (TB,F) gather.
    gather_idx = jnp.clip(labels_i32, 0, f - 1).reshape(b, 1)
    label_logit = jnp.take_along_axis(logits, gather_idx, axis=1)      # (B, 1)

    def tile_index(j, i):
        # Clamp the (rare) overhanging (j, i) combo to the last real tile; its
        # rows are fully masked in-kernel, so it contributes nothing.
        return jnp.minimum(j * n_inner + i, n_tiles - 1)

    kernel = functools.partial(_topk_acc_kernel, k=k, total_batch=b,
                               chunk_bounds=tuple(chunk_bounds))

    partials = pl.pallas_call(
        kernel,
        out_shape=jax.ShapeDtypeStruct((n_outer, 1), jnp.float32),
        grid_spec=pltpu.PrefetchScalarGridSpec(
            num_scalar_prefetch=0,
            grid=(n_outer, n_inner),
            in_specs=[
                pl.BlockSpec((tile_b, f), lambda j, i: (tile_index(j, i), 0)),
                pl.BlockSpec((tile_b, 1), lambda j, i: (tile_index(j, i), 0)),
                pl.BlockSpec((tile_b, 1), lambda j, i: (tile_index(j, i), 0)),
            ],
            out_specs=pl.BlockSpec((1, 1), lambda j, i: (j, 0)),
            scratch_shapes=[pltpu.VMEM((tile_b, 1), jnp.float32)],
        ),
        compiler_params=pltpu.CompilerParams(
            dimension_semantics=("parallel", "arbitrary"),
            vmem_limit_bytes=int(vmem_limit),
        ),
    )(logits, labels_2d, label_logit)

    return jnp.sum(partials) / jnp.float32(b)


def _reference(logits, labels, k):
    preds = jax.nn.softmax(logits, axis=1)
    topk_probs, topk_idx = jax.lax.top_k(preds, k)
    correct = (labels.reshape(-1, 1) == topk_idx).astype(preds.dtype) * topk_probs
    correct = (jnp.sum(correct, axis=1) > 0).astype(jnp.float32)
    return jnp.mean(correct)


if __name__ == "__main__":
    key = jax.random.PRNGKey(0)
    tests = [
        # (B,   F,    k, dtype,        max_tile_b, core_splits)
        (32,  128,  3, jnp.float32,  1024, None),  # single tile, auto split
        (20,  128,  5, jnp.float32,  1024, None),  # batch remainder (partial tile)
        (40,  128,  2, jnp.float32,  8,    2),     # multi-tile accum + forced 2-way split
        (32,  128,  1, jnp.bfloat16, 1024, None),  # bf16 streamed natively
        (24, 1536,  4, jnp.bfloat16, 1024, None),  # multi-chunk F sweep (1024+512), bf16
        (16, 3000,  5, jnp.float32,  1024, None),  # multi-chunk F with non-128 remainder
    ]
    for (b, f, k, dtype, mtb, splits) in tests:
        key, k1, k2 = jax.random.split(key, 3)
        logits = jax.random.normal(k1, (b, f), dtype=jnp.float32).astype(dtype)
        labels = jax.random.randint(k2, (b,), 0, f, dtype=jnp.int32)

        acc = topk_accuracy(logits, labels, k, max_tile_b=mtb,
                            num_core_splits=splits)
        acc = jax.block_until_ready(acc)

        ref = _reference(logits.astype(jnp.float32), labels, k)
        assert jnp.allclose(acc, ref, atol=1e-6), (b, f, k, str(dtype), acc, ref)

    print("KERNEL_OK")
</pallas_src>

<mosaic_0001>
module attributes {stable_mosaic.version = 11 : i64} {
  func.func @_topk_acc_kernel(%arg0: i32, %arg1: i32, %arg2: memref<32x128xf32, #tpu.memory_space<vmem>>, %arg3: memref<32x1xi32, #tpu.memory_space<vmem>>, %arg4: memref<32x1xf32, #tpu.memory_space<vmem>>, %arg5: memref<1x1xf32, #tpu.memory_space<vmem>>, %arg6: memref<32x1xf32, #tpu.memory_space<vmem>>) attributes {dimension_semantics = [#tpu.dimension_semantics<parallel>, #tpu.dimension_semantics<arbitrary>], iteration_bounds = array<i64: 1, 1>, scalar_prefetch = 0 : i64, scratch_operands = 1 : i64, tpu.core_type = #tpu.core_type<tc>, window_params = [{transform_indices = @transform_0, window_bounds = array<i64: 32, 128>}, {transform_indices = @transform_1, window_bounds = array<i64: 32, 1>}, {transform_indices = @transform_2, window_bounds = array<i64: 32, 1>}, {transform_indices = @transform_3, window_bounds = array<i64: 1, 1>}]} {
    %c0_i32 = arith.constant 0 : i32
    %0 = arith.cmpi eq, %arg1, %c0_i32 : i32
    %1 = arith.extui %0 : i1 to i32
    %c0_i32_0 = arith.constant 0 : i32
    %2 = arith.cmpi ne, %1, %c0_i32_0 : i32
    scf.if %2 {
      %cst_20 = arith.constant 0.000000e+00 : f32
      %57 = vector.broadcast %cst_20 : f32 to vector<32x1xf32>
      %c0_21 = arith.constant 0 : index
      %c0_22 = arith.constant 0 : index
      %58 = vector.load %arg6[%c0_21, %c0_22] : memref<32x1xf32, #tpu.memory_space<vmem>>, vector<32x1xf32>
      tpu.vector_store %arg6[%c0_21, %c0_22], %57 {strides = array<i32>} : memref<32x1xf32, #tpu.memory_space<vmem>>, vector<32x1xf32>,
    } else {
    }
    %c0 = arith.constant 0 : index
    %c0_1 = arith.constant 0 : index
    %3 = vector.load %arg3[%c0, %c0_1] : memref<32x1xi32, #tpu.memory_space<vmem>>, vector<32x1xi32>
    %c0_2 = arith.constant 0 : index
    %c0_3 = arith.constant 0 : index
    %4 = vector.load %arg4[%c0_2, %c0_3] : memref<32x1xf32, #tpu.memory_space<vmem>>, vector<32x1xf32>
    %cst = arith.constant 0.000000e+00 : f32
    %5 = vector.broadcast %cst : f32 to vector<32x1xf32>
    %cst_4 = arith.constant 0xFF800000 : f32
    %6 = vector.broadcast %cst_4 : f32 to vector<32x1xf32>
    %c0_5 = arith.constant 0 : index
    %c0_6 = arith.constant 0 : index
    %7 = vector.load %arg2[%c0_5, %c0_6] : memref<32x128xf32, #tpu.memory_space<vmem>>, vector<32x128xf32>
    %8 = tpu.iota {dimensions = array<i32: 1>} : vector<32x128xi32>
    %c0_i32_7 = arith.constant 0 : i32
    %9 = vector.broadcast %c0_i32_7 : i32 to vector<32x128xi32>
    %10 = arith.addi %8, %9 : vector<32x128xi32>
    %11 = vector.broadcast %4 : vector<32x1xf32> to vector<32x128xf32>
    %12 = arith.cmpf ogt, %7, %11 : vector<32x128xf32>
    %13 = vector.broadcast %4 : vector<32x1xf32> to vector<32x128xf32>
    %14 = arith.cmpf oeq, %7, %13 : vector<32x128xf32>
    %15 = vector.broadcast %3 : vector<32x1xi32> to vector<32x128xi32>
    %16 = arith.cmpi slt, %10, %15 : vector<32x128xi32>
    %17 = arith.andi %14, %16 : vector<32x128xi1>
    %18 = arith.ori %12, %17 : vector<32x128xi1>
    %19 = arith.extui %18 : vector<32x128xi1> to vector<32x128xi32>
    %20 = arith.sitofp %19 : vector<32x128xi32> to vector<32x128xf32>
    %cst_8 = arith.constant dense<0.000000e+00> : vector<32xf32>
    %21 = vector.multi_reduction <add>, %20, %cst_8 [1] : vector<32x128xf32> to vector<32xf32>
    %22 = vector.shape_cast %21 : vector<32xf32> to vector<32x1xf32>
    %23 = arith.addf %5, %22 : vector<32x1xf32>
    %cst_9 = arith.constant dense<0xFF800000> : vector<32xf32>
    %24 = vector.multi_reduction <maximumf>, %7, %cst_9 [1] : vector<32x128xf32> to vector<32xf32>
    %25 = vector.shape_cast %24 : vector<32xf32> to vector<32x1xf32>
    %26 = arith.maximumf %6, %25 : vector<32x1xf32>
    %cst_10 = arith.constant 3.000000e+00 : f32
    %27 = vector.broadcast %cst_10 : f32 to vector<32x1xf32>
    %28 = arith.cmpf olt, %23, %27 : vector<32x1xf32>
    %29 = arith.subf %4, %26 : vector<32x1xf32>
    %30 = math.exp %29 : vector<32x1xf32>
    %cst_11 = arith.constant 0.000000e+00 : f32
    %31 = vector.broadcast %cst_11 : f32 to vector<32x1xf32>
    %32 = arith.cmpf ogt, %30, %31 : vector<32x1xf32>
    %c0_i32_12 = arith.constant 0 : i32
    %33 = vector.broadcast %c0_i32_12 : i32 to vector<32x1xi32>
    %34 = arith.cmpi sge, %3, %33 : vector<32x1xi32>
    %c128_i32 = arith.constant 128 : i32
    %35 = vector.broadcast %c128_i32 : i32 to vector<32x1xi32>
    %36 = arith.cmpi slt, %3, %35 : vector<32x1xi32>
    %37 = arith.andi %34, %36 : vector<32x1xi1>
    %c1_i32 = arith.constant 1 : i32
    %38 = arith.muli %arg0, %c1_i32 : i32
    %39 = arith.addi %38, %arg1 : i32
    %40 = tpu.iota {dimensions = array<i32: 0>} : vector<32x1xi32>
    %c32_i32 = arith.constant 32 : i32
    %41 = arith.muli %39, %c32_i32 : i32
    %42 = vector.broadcast %41 : i32 to vector<32x1xi32>
    %43 = arith.addi %40, %42 : vector<32x1xi32>
    %c32_i32_13 = arith.constant 32 : i32
    %44 = vector.broadcast %c32_i32_13 : i32 to vector<32x1xi32>
    %45 = arith.cmpi slt, %43, %44 : vector<32x1xi32>
    %c0_14 = arith.constant 0 : index
    %c0_15 = arith.constant 0 : index
    %46 = vector.load %arg6[%c0_14, %c0_15] : memref<32x1xf32, #tpu.memory_space<vmem>>, vector<32x1xf32>
    %47 = arith.andi %28, %32 : vector<32x1xi1>
    %48 = arith.andi %47, %37 : vector<32x1xi1>
    %49 = arith.andi %48, %45 : vector<32x1xi1>
    %50 = arith.extui %49 : vector<32x1xi1> to vector<32x1xi32>
    %51 = arith.sitofp %50 : vector<32x1xi32> to vector<32x1xf32>
    %52 = arith.addf %46, %51 : vector<32x1xf32>
    %c0_16 = arith.constant 0 : index
    %c0_17 = arith.constant 0 : index
    %53 = vector.load %arg6[%c0_16, %c0_17] : memref<32x1xf32, #tpu.memory_space<vmem>>, vector<32x1xf32>
    tpu.vector_store %arg6[%c0_16, %c0_17], %52 {strides = array<i32>} : memref<32x1xf32, #tpu.memory_space<vmem>>, vector<32x1xf32>,
    %c0_i32_18 = arith.constant 0 : i32
    %54 = arith.cmpi eq, %arg1, %c0_i32_18 : i32
    %55 = arith.extui %54 : i1 to i32
    %c0_i32_19 = arith.constant 0 : i32
    %56 = arith.cmpi ne, %55, %c0_i32_19 : i32
    scf.if %56 {
      %c0_20 = arith.constant 0 : index
      %c0_21 = arith.constant 0 : index
      %57 = vector.load %arg6[%c0_20, %c0_21] : memref<32x1xf32, #tpu.memory_space<vmem>>, vector<32x1xf32>
      %cst_22 = arith.constant dense<0.000000e+00> : vector<1xf32>
      %58 = vector.multi_reduction <add>, %57, %cst_22 [0] : vector<32x1xf32> to vector<1xf32>
      %59 = vector.shape_cast %58 : vector<1xf32> to vector<1x1xf32>
      %c0_23 = arith.constant 0 : index
      %c0_24 = arith.constant 0 : index
      %60 = vector.load %arg5[%c0_23, %c0_24] : memref<1x1xf32, #tpu.memory_space<vmem>>, vector<1x1xf32>
      tpu.vector_store %arg5[%c0_23, %c0_24], %59 {strides = array<i32>} : memref<1x1xf32, #tpu.memory_space<vmem>>, vector<1x1xf32>,
    } else {
    }
    return
  }
  func.func @transform_0(%arg0: i32, %arg1: i32) -> (i32, i32) {
    %c1_i32 = arith.constant 1 : i32
    %0 = arith.muli %arg0, %c1_i32 : i32
    %1 = arith.addi %0, %arg1 : i32
    %c0_i32 = arith.constant 0 : i32
    %2 = arith.minsi %1, %c0_i32 : i32
    %c0_i32_0 = arith.constant 0 : i32
    %c0_i32_1 = arith.constant 0 : i32
    return %2, %c0_i32_0 : i32, i32
  }
  func.func @transform_1(%arg0: i32, %arg1: i32) -> (i32, i32) {
    %c1_i32 = arith.constant 1 : i32
    %0 = arith.muli %arg0, %c1_i32 : i32
    %1 = arith.addi %0, %arg1 : i32
    %c0_i32 = arith.constant 0 : i32
    %2 = arith.minsi %1, %c0_i32 : i32
    %c0_i32_0 = arith.constant 0 : i32
    %c0_i32_1 = arith.constant 0 : i32
    return %2, %c0_i32_0 : i32, i32
  }
  func.func @transform_2(%arg0: i32, %arg1: i32) -> (i32, i32) {
    %c1_i32 = arith.constant 1 : i32
    %0 = arith.muli %arg0, %c1_i32 : i32
    %1 = arith.addi %0, %arg1 : i32
    %c0_i32 = arith.constant 0 : i32
    %2 = arith.minsi %1, %c0_i32 : i32
    %c0_i32_0 = arith.constant 0 : i32
    %c0_i32_1 = arith.constant 0 : i32
    return %2, %c0_i32_0 : i32, i32
  }
  func.func @transform_3(%arg0: i32, %arg1: i32) -> (i32, i32) {
    %c0_i32 = arith.constant 0 : i32
    %c0_i32_0 = arith.constant 0 : i32
    return %arg0, %c0_i32 : i32, i32
  }
}

</mosaic_0001>

<llo_original>
// kernel: tpu_custom_call.1
$region0: #{tpu_custom_call.1}
  #allocation0 [shape = 'u32[]', space=smem, size = 0x4, offset = 0x4, fixed_abs, tag = 'smem constant byte address 0x4 - core index']
  #allocation1 [shape = 'u32[144,128]{1,0:T(1,128)}', space=vmem, size = 0x12000, scoped, tag = 'internal scratch']
  #allocation2 [shape = 'f32[32,1]{1,0:T(8,128)}', space=vmem, size = 0x4000, scoped, tag = 'scratch operand']
  %s0 = inlined_call_operand.vmem [shape: f32[32,128], index: 0, kind: input, shape index: {}]
  %s1 = inlined_call_operand.vmem [shape: s32[32,1], index: 1, kind: input, shape index: {}]
  %s2 = inlined_call_operand.vmem [shape: f32[32,1], index: 2, kind: input, shape index: {}]
  %s3 = inlined_call_operand.hbm [shape: f32[1,1], index: 3, kind: output, shape index: {}]
  %s4 = sld [smem:[#allocation0]]
  $region30: #{tpu_custom_call.1} parent=0
    _
  %s6 = ssub.s32 1, %s4
  %s7 = scalar_select 0, %s6, %s4
  $region1: #{tpu_custom_call.1} parent=0
    #allocation3 [shape = 'u8[512]{0}', space=vmem, size = 0x400, scoped, tag = 'output window, operand 0, single buffered']
    #allocation4 [shape = 's32[1]{0}', space=sflag, size = 0x4, scoped, tag = 'scoped memory for tpu_custom_call.1']
    %8 = vsyncpa [#allocation4], 0
    // Predicated region
    $region2: #{tpu_custom_call.1} parent=1 // pred_check
      _
    $region3: #{tpu_custom_call.1} parent=1 // pred_check_branch
      %10 = sbr.rel (0) target = $region5
    $region4: #{tpu_custom_call.1} parent=1 // pred_region
      %s11 = sadd.s32 0, 0
      %p12 = scmp.lt.s32.totalorder %s11, 0
      %s13 = scalar_select %p12, %s11, 0
      %s14 = smul.u32 4, %s13
      %p15 = scmp.lt.s32.totalorder %s14, 3
      %s16 = scalar_select %p15, %s14, 3
      %s17 = smul.addr %s16, 8
      %s18 = scalar_lea.vmem %s0, %s17
      %s19 = sadd.s32 0, 0
      %p20 = scmp.lt.s32.totalorder %s19, 0
      %s21 = scalar_select %p20, %s19, 0
      %s22 = smul.u32 4, %s21
    $region5: #{tpu_custom_call.1} parent=1 // pred_fallthru
      _
    // Predicated region
    $region6: #{tpu_custom_call.1} parent=1 // pred_check
      _
    $region7: #{tpu_custom_call.1} parent=1 // pred_check_branch
      %24 = sbr.rel (0) target = $region9
    $region8: #{tpu_custom_call.1} parent=1 // pred_region
      %s25 = sadd.s32 0, 0
      %p26 = scmp.lt.s32.totalorder %s25, 0
      %s27 = scalar_select %p26, %s25, 0
      %s28 = smul.u32 4, %s27
      %p29 = scmp.lt.s32.totalorder %s28, 3
      %s30 = scalar_select %p29, %s28, 3
      %s31 = smul.addr %s30, 8
      %s32 = scalar_lea.vmem %s1, %s31
      %s33 = sadd.s32 0, 0
      %p34 = scmp.lt.s32.totalorder %s33, 0
      %s35 = scalar_select %p34, %s33, 0
      %s36 = smul.u32 4, %s35
    $region9: #{tpu_custom_call.1} parent=1 // pred_fallthru
      _
    // Predicated region
    $region10: #{tpu_custom_call.1} parent=1 // pred_check
      _
    $region11: #{tpu_custom_call.1} parent=1 // pred_check_branch
      %38 = sbr.rel (0) target = $region13
    $region12: #{tpu_custom_call.1} parent=1 // pred_region
      %s39 = sadd.s32 0, 0
      %p40 = scmp.lt.s32.totalorder %s39, 0
      %s41 = scalar_select %p40, %s39, 0
      %s42 = smul.u32 4, %s41
      %p43 = scmp.lt.s32.totalorder %s42, 3
      %s44 = scalar_select %p43, %s42, 3
      %s45 = smul.addr %s44, 8
      %s46 = scalar_lea.vmem %s2, %s45
      %s47 = sadd.s32 0, 0
      %p48 = scmp.lt.s32.totalorder %s47, 0
      %s49 = scalar_select %p48, %s47, 0
      %s50 = smul.u32 4, %s49
    $region13: #{tpu_custom_call.1} parent=1 // pred_fallthru
      _
    %s51 = sadd.s32 0, 0
    %p52 = scmp.lt.s32.totalorder %s51, 0
    %s53 = scalar_select %p52, %s51, 0
    %s54 = smul.u32 4, %s53
    %p55 = scmp.lt.s32.totalorder %s54, 3
    %s56 = scalar_select %p55, %s54, 3
    %s57 = smul.addr %s56, 8
    %s58 = scalar_lea.vmem %s0, %s57
    %s59 = sadd.s32 0, 0
    %p60 = scmp.lt.s32.totalorder %s59, 0
    %s61 = scalar_select %p60, %s59, 0
    %s62 = smul.u32 4, %s61
    %p63 = scmp.lt.s32.totalorder %s62, 3
    %s64 = scalar_select %p63, %s62, 3
    %s65 = smul.addr %s64, 8
    %s66 = scalar_lea.vmem %s1, %s65
    %s67 = sadd.s32 0, 0
    %p68 = scmp.lt.s32.totalorder %s67, 0
    %s69 = scalar_select %p68, %s67, 0
    %s70 = smul.u32 4, %s69
    %p71 = scmp.lt.s32.totalorder %s70, 3
    %s72 = scalar_select %p71, %s70, 3
    %s73 = smul.addr %s72, 8
    %s74 = scalar_lea.vmem %s2, %s73
    %s75 = sadd.s32 0, 0
    %p76 = scmp.lt.s32.totalorder %s75, 0
    %s77 = scalar_select %p76, %s75, 0
    %s78 = smul.u32 4, %s77
    %p79 = scmp.lt.s32.totalorder %s78, 3
    %s80 = scalar_select %p79, %s78, 3
    %s81 = smul.addr %s80, 8
    %s82 = scalar_lea.vmem %s0, %s81
    %s83 = sadd.s32 0, 0
    %p84 = scmp.lt.s32.totalorder %s83, 0
    %s85 = scalar_select %p84, %s83, 0
    %s86 = smul.u32 4, %s85
    %s87 = sadd.s32 0, 0
    %p88 = scmp.lt.s32.totalorder %s87, 0
    %s89 = scalar_select %p88, %s87, 0
    %s90 = smul.u32 4, %s89
    %p91 = scmp.lt.s32.totalorder %s90, 3
    %s92 = scalar_select %p91, %s90, 3
    %s93 = smul.addr %s92, 8
    %s94 = scalar_lea.vmem %s1, %s93
    %s95 = sadd.s32 0, 0
    %p96 = scmp.lt.s32.totalorder %s95, 0
    %s97 = scalar_select %p96, %s95, 0
    %s98 = smul.u32 4, %s97
    %s99 = sadd.s32 0, 0
    %p100 = scmp.lt.s32.totalorder %s99, 0
    %s101 = scalar_select %p100, %s99, 0
    %s102 = smul.u32 4, %s101
    %p103 = scmp.lt.s32.totalorder %s102, 3
    %s104 = scalar_select %p103, %s102, 3
    %s105 = smul.addr %s104, 8
    %s106 = scalar_lea.vmem %s2, %s105
    %s107 = sadd.s32 0, 0
    %p108 = scmp.lt.s32.totalorder %s107, 0
    %s109 = scalar_select %p108, %s107, 0
    %s110 = smul.u32 4, %s109
    %p111 = scmp.eq.s32.totalorder 0, 0
    // Predicated region
    $region14: #{tpu_custom_call.1} parent=1 // pred_check
      %p112 = pneg %p111
    $region15: #{tpu_custom_call.1} parent=1 // pred_check_branch
      %114 = sbr.rel (%p112) target = $region17
    $region16: #{tpu_custom_call.1} parent=1 // pred_region
      %vm115 = vcmask 7168
      %116 = vst.msk [vmem:[#allocation2] sm:$0xff] %vm115, 0.0
      %117 = vst.msk [vmem:[#allocation2 + $0x8] sm:$0xff] %vm115, 0.0
      %118 = vst.msk [vmem:[#allocation2 + $0x10] sm:$0xff] %vm115, 0.0
      %119 = vst.msk [vmem:[#allocation2 + $0x18] sm:$0xff] %vm115, 0.0
    $region17: #{tpu_custom_call.1} parent=1 // pred_fallthru
      _
    %v120 = vld [vmem:[%s94] sm:$0xff]
    %v121 = vld [vmem:[%s94 + $0x8] sm:$0xff]
    %v122 = vld [vmem:[%s94 + $0x10] sm:$0xff]
    %v123 = vld [vmem:[%s94 + $0x18] sm:$0xff]
    %v124 = vld [vmem:[%s106] sm:$0xff]
    %v125 = vld [vmem:[%s106 + $0x8] sm:$0xff]
    %v126 = vld [vmem:[%s106 + $0x10] sm:$0xff]
    %v127 = vld [vmem:[%s106 + $0x18] sm:$0xff]
    %v128 = vld [vmem:[%s82] sm:$0xff]
    %v129 = vld [vmem:[%s82 + $0x8] sm:$0xff]
    %v130 = vld [vmem:[%s82 + $0x10] sm:$0xff]
    %v131 = vld [vmem:[%s82 + $0x18] sm:$0xff]
    %v132 = vlaneseq
    %v133 = vand.u32 %v132, 127
    %135 = vset.pattern.permute.xlu0 0
    %136 = vperm.xlu0 %135, %v124
    %v137 = vpop.permute.xlu0 %136
    %140 = vset.pattern.permute.xlu0 0
    %141 = vperm.xlu0 %140, %v125
    %v142 = vpop.permute.xlu0 %141
    %145 = vset.pattern.permute.xlu0 0
    %146 = vperm.xlu0 %145, %v126
    %v147 = vpop.permute.xlu0 %146
    %150 = vset.pattern.permute.xlu0 0
    %151 = vperm.xlu0 %150, %v127
    %v152 = vpop.permute.xlu0 %151
    %vm154 = vcmp.gt.f32.partialorder %v128, %v137
    %vm155 = vcmp.gt.f32.partialorder %v129, %v142
    %vm156 = vcmp.gt.f32.partialorder %v130, %v147
    %vm157 = vcmp.gt.f32.partialorder %v131, %v152
    %vm158 = vcmp.eq.f32.partialorder %v128, %v137
    %vm159 = vcmp.eq.f32.partialorder %v129, %v142
    %vm160 = vcmp.eq.f32.partialorder %v130, %v147
    %vm161 = vcmp.eq.f32.partialorder %v131, %v152
    %162 = vset.pattern.permute.xlu0 0
    %163 = vperm.xlu0 %162, %v120
    %v164 = vpop.permute.xlu0 %163
    %165 = vset.pattern.permute.xlu0 0
    %166 = vperm.xlu0 %165, %v121
    %v167 = vpop.permute.xlu0 %166
    %168 = vset.pattern.permute.xlu0 0
    %169 = vperm.xlu0 %168, %v122
    %v170 = vpop.permute.xlu0 %169
    %171 = vset.pattern.permute.xlu0 0
    %172 = vperm.xlu0 %171, %v123
    %v173 = vpop.permute.xlu0 %172
    %vm174 = vcmp.lt.s32.totalorder %v133, %v164
    %vm175 = vcmp.lt.s32.totalorder %v133, %v167
    %vm176 = vcmp.lt.s32.totalorder %v133, %v170
    %vm177 = vcmp.lt.s32.totalorder %v133, %v173
    %vm178 = vmand %vm158, %vm174
    %vm179 = vmand %vm159, %vm175
    %vm180 = vmand %vm160, %vm176
    %vm181 = vmand %vm161, %vm177
    %vm182 = vmor %vm154, %vm178
    %vm183 = vmor %vm155, %vm179
    %vm184 = vmor %vm156, %vm180
    %vm185 = vmor %vm157, %vm181
    %v186 = vsel %vm182, 1, 0
    %v187 = vsel %vm183, 1, 0
    %v188 = vsel %vm184, 1, 0
    %v189 = vsel %vm185, 1, 0
    %v190 = vcvt.s32.f32 %v186
    %v191 = vcvt.s32.f32 %v187
    %v192 = vcvt.s32.f32 %v188
    %v193 = vcvt.s32.f32 %v189
    %194 = vadd.xlane.f32.xlu0 %v190
    %v195 = vpop.xlane.xlu0 %194
    %196 = vadd.xlane.f32.xlu0 %v191
    %v197 = vpop.xlane.xlu0 %196
    %198 = vadd.xlane.f32.xlu0 %v192
    %v199 = vpop.xlane.xlu0 %198
    %200 = vadd.xlane.f32.xlu0 %v193
    %v201 = vpop.xlane.xlu0 %200
    %v202 = vadd.f32 %v195, 0.0
    %v203 = vadd.f32 %v197, 0.0
    %v204 = vadd.f32 %v199, 0.0
    %v205 = vadd.f32 %v201, 0.0
    %206 = vmax.xlane.f32.xlu0 %v128
    %v207 = vpop.xlane.xlu0 %206
    %208 = vmax.xlane.f32.xlu0 %v129
    %v209 = vpop.xlane.xlu0 %208
    %210 = vmax.xlane.f32.xlu0 %v130
    %v211 = vpop.xlane.xlu0 %210
    %212 = vmax.xlane.f32.xlu0 %v131
    %v213 = vpop.xlane.xlu0 %212
    %vm214 = vcmp.lt.f32.partialorder %v202, 3.0
    %vm215 = vcmp.lt.f32.partialorder %v203, 3.0
    %vm216 = vcmp.lt.f32.partialorder %v204, 3.0
    %vm217 = vcmp.lt.f32.partialorder %v205, 3.0
    %v218 = vsub.f32 %v124, %v207
    %v219 = vsub.f32 %v125, %v209
    %v220 = vsub.f32 %v126, %v211
    %v221 = vsub.f32 %v127, %v213
    %v222 = vmul.f32 %v218, 1.442695
    %v223 = vpow.pop %v222
    %v224 = vmul.f32 %v219, 1.442695
    %v225 = vpow.pop %v224
    %v226 = vmul.f32 %v220, 1.442695
    %v227 = vpow.pop %v226
    %v228 = vmul.f32 %v221, 1.442695
    %v229 = vpow.pop %v228
    %vm230 = vcmp.gt.f32.partialorder %v223, 0.0
    %vm231 = vcmp.gt.f32.partialorder %v225, 0.0
    %vm232 = vcmp.gt.f32.partialorder %v227, 0.0
    %vm233 = vcmp.gt.f32.partialorder %v229, 0.0
    %vm234 = vcmp.ge.s32.totalorder %v120, 0
    %vm235 = vcmp.ge.s32.totalorder %v121, 0
    %vm236 = vcmp.ge.s32.totalorder %v122, 0
    %vm237 = vcmp.ge.s32.totalorder %v123, 0
    %vm238 = vcmp.lt.s32.totalorder %v120, 128
    %vm239 = vcmp.lt.s32.totalorder %v121, 128
    %vm240 = vcmp.lt.s32.totalorder %v122, 128
    %vm241 = vcmp.lt.s32.totalorder %v123, 128
    %vm242 = vmand %vm234, %vm238
    %vm243 = vmand %vm235, %vm239
    %vm244 = vmand %vm236, %vm240
    %vm245 = vmand %vm237, %vm241
    %s246 = sadd.s32 0, 0
    %v247 = vlaneseq
    %v248 = vshrl.u32 %v247, 7
    %v249 = vadd.s32 %v248, 8
    %v250 = vadd.s32 %v248, 16
    %v251 = vadd.s32 %v248, 24
    %s252 = smul.u32 %s246, 32
    %v253 = vstv %s252
    %v254 = vadd.s32 %v248, %v253
    %v255 = vadd.s32 %v249, %v253
    %v256 = vadd.s32 %v250, %v253
    %v257 = vadd.s32 %v251, %v253
    %vm258 = vcmp.lt.s32.totalorder %v254, 32
    %vm259 = vcmp.lt.s32.totalorder %v255, 32
    %vm260 = vcmp.lt.s32.totalorder %v256, 32
    %vm261 = vcmp.lt.s32.totalorder %v257, 32
    %v262 = vld [vmem:[#allocation2] sm:$0xff]
    %v263 = vld [vmem:[#allocation2 + $0x8] sm:$0xff]
    %v264 = vld [vmem:[#allocation2 + $0x10] sm:$0xff]
    %v265 = vld [vmem:[#allocation2 + $0x18] sm:$0xff]
    %vm266 = vmand %vm214, %vm230
    %vm267 = vmand %vm215, %vm231
    %vm268 = vmand %vm216, %vm232
    %vm269 = vmand %vm217, %vm233
    %vm270 = vmand %vm266, %vm242
    %vm271 = vmand %vm267, %vm243
    %vm272 = vmand %vm268, %vm244
    %vm273 = vmand %vm269, %vm245
    %vm274 = vmand %vm270, %vm258
    %vm275 = vmand %vm271, %vm259
    %vm276 = vmand %vm272, %vm260
    %vm277 = vmand %vm273, %vm261
    %v278 = vsel %vm274, 1, 0
    %v279 = vsel %vm275, 1, 0
    %v280 = vsel %vm276, 1, 0
    %v281 = vsel %vm277, 1, 0
    %v282 = vcvt.s32.f32 %v278
    %v283 = vcvt.s32.f32 %v279
    %v284 = vcvt.s32.f32 %v280
    %v285 = vcvt.s32.f32 %v281
    %v286 = vadd.f32 %v262, %v282
    %v287 = vadd.f32 %v263, %v283
    %v288 = vadd.f32 %v264, %v284
    %v289 = vadd.f32 %v265, %v285
    %vm290 = vcmask 7168
    %291 = vst.msk [vmem:[#allocation2] sm:$0xff] %vm290, %v286
    %292 = vst.msk [vmem:[#allocation2 + $0x8] sm:$0xff] %vm290, %v287
    %293 = vst.msk [vmem:[#allocation2 + $0x10] sm:$0xff] %vm290, %v288
    %294 = vst.msk [vmem:[#allocation2 + $0x18] sm:$0xff] %vm290, %v289
    // Predicated region
    $region18: #{tpu_custom_call.1} parent=1 // pred_check
      %p295 = pneg %p111
    $region19: #{tpu_custom_call.1} parent=1 // pred_check_branch
      %297 = sbr.rel (%p295) target = $region21
    $region20: #{tpu_custom_call.1} parent=1 // pred_region
      %v298 = vld [vmem:[#allocation2] sm:$0xff]
      %v299 = vld [vmem:[#allocation2 + $0x8] sm:$0xff]
      %v300 = vld [vmem:[#allocation2 + $0x10] sm:$0xff]
      %v301 = vld [vmem:[#allocation2 + $0x18] sm:$0xff]
      %v302 = vsel %vm290, %v298, 0.0
      %v303 = vsel %vm290, %v299, 0.0
      %v304 = vadd.f32 %v302, %v303
      %v305 = vsel %vm290, %v300, 0.0
      %v306 = vadd.f32 %v304, %v305
      %v307 = vsel %vm290, %v301, 0.0
      %v308 = vadd.f32 %v306, %v307
      %v309 = vrot.slane %v308, 4
      %v310 = vadd.f32 %v308, %v309
      %v311 = vrot.slane %v310, 2
      %v312 = vadd.f32 %v310, %v311
      %v313 = vrot.slane %v312, 1
      %v314 = vadd.f32 %v312, %v313
      %vm315 = vcmask 0
      %316 = vst.msk [vmem:[#allocation3] sm:$0x1] %vm315, %v314
    $region21: #{tpu_custom_call.1} parent=1 // pred_fallthru
      _
    // Predicated region
    $region22: #{tpu_custom_call.1} parent=1 // pred_check
      _
    $region23: #{tpu_custom_call.1} parent=1 // pred_check_branch
      %318 = sbr.rel (0) target = $region25
    $region24: #{tpu_custom_call.1} parent=1 // pred_region
      %s320 = ssub.s32 16, 16
      %321 = vsyncadd [#allocation4], %s320
      %s323 = sshll.u32 [#allocation3], 4
      %s324 = int_to_ptr.vmem [resolvable:$true] %s323
      %326 = dma.vmem_to_hbm [thread:$0]  %s324, 16, %s3, [#allocation4]
    $region25: #{tpu_custom_call.1} parent=1 // pred_fallthru
      _
    // Predicated region
    $region26: #{tpu_custom_call.1} parent=1 // pred_check
      _
    $region27: #{tpu_custom_call.1} parent=1 // pred_check_branch
      %328 = sbr.rel (0) target = $region29
    $region28: #{tpu_custom_call.1} parent=1 // pred_region
      %329 = dma.done [#allocation4], 16
    $region29: #{tpu_custom_call.1} parent=1 // pred_fallthru
      _
    %330 = vsyncpa [#allocation4], 1

</llo_original>
